<compile_context>
chip_gen: v6e
topology: v6e:2x2x1
jax: 0.10.0
libtpu: 0.0.40
codegen_flags: <defaults>
</compile_context>

<pallas_src>
import functools

import jax
import jax.numpy as jnp
from jax.experimental import pallas as pl
from jax.experimental.pallas import tpu as pltpu

_MIB = 1024 * 1024


@functools.lru_cache(maxsize=None)
def _tpu_params():
    """(physical VMEM bytes per core, TensorCores per chip) — best effort."""
    vmem = 64 * _MIB          # conservative fallback (v7x-sized): safe everywhere
    try:
        info = pltpu.get_tpu_info()
        cap = getattr(info, "vmem_capacity_bytes", None)
        if cap:
            vmem = int(cap)
    except Exception:
        pass
    kind = ""
    try:
        kind = jax.devices()[0].device_kind.lower()
    except Exception:
        pass
    if "v7" in kind or "tpu7" in kind:
        cores = 2
    elif ("v5" in kind) or ("v6" in kind) or ("v4" in kind):
        cores = 1
    else:
        # Unknown kind: if VMEM looks v7x-sized assume 2 TCs (cheap if wrong).
        cores = 2 if vmem <= 64 * _MIB else 1
    return vmem, cores


def _budgets(vmem_bytes):
    """Per-pipeline-buffer x-tile budget and scoped VMEM limit."""
    if vmem_bytes >= 96 * _MIB:              # v5e / v6e: 128 MiB physical
        buf, limit = 12 * _MIB, 64 * _MIB
    else:                                    # v7x (64 MiB physical) / unknown
        buf, limit = 8 * _MIB, 48 * _MIB
    limit = min(limit, max(32 * _MIB, vmem_bytes - 16 * _MIB))
    return buf, limit


def _pick_bn(n, c, hw, itemsize, buf_budget, min_steps):
    """Images per grid step: large (amortizes per-step overhead + epilogue),
    but keep N//bn >= min_steps so every TensorCore gets work, and only grow
    past 8 when the whole spatial extent still fits in one chunk."""
    want_steps = min(min_steps, n) if n > 0 else 1
    for cand in (32, 16, 8, 4, 2, 1):
        if n % cand:
            continue
        if n // cand < want_steps:
            continue
        if cand > 8 and cand * c * hw * itemsize > buf_budget:
            continue
        return cand
    return 1


def _pick_chunk(hw, bn, c, itemsize, buf_budget):
    """Spatial lanes per step. Multiple of 128, >= ~512 B contiguous run per
    (n, c) row, sized to the per-buffer budget. Prefers a clean divisor of HW
    (no masked tail) when one exists within ~25% of the budget size."""
    row_bytes = bn * c * itemsize
    if row_bytes * hw <= buf_budget:
        return hw                                   # whole spatial extent
    lane_min = max(128, ((512 // itemsize + 127) // 128) * 128)
    chunk = max(lane_min, (buf_budget // row_bytes) // 128 * 128)
    lo = max(lane_min, (chunk * 3 // 4) // 128 * 128)
    for cand in range(chunk, lo - 1, -128):
        if hw % cand == 0:
            return cand
    return chunk                                    # masked-tail path


def _channel_attention_kernel(x_ref, w1t_ref, w2t_ref, o_ref, acc_ref,
                              *, total_hw, chunk):
    # x_ref:   (bn, C, chunk)  bn images, one spatial chunk (lane axis)
    # w1t_ref: (C, Ch)         fc1 weight transposed (Ch = C // 16)
    # w2t_ref: (Ch, C)         fc2 weight transposed
    # o_ref:   (1, bn, C)      sigmoid attention weights for this image group
    # acc_ref: (2, bn, C) f32  running [sum; max] accumulators (VMEM scratch)
    k = pl.program_id(1)
    nk = pl.num_programs(1)
    bn, c = o_ref.shape[1], o_ref.shape[2]

    @pl.when(k == 0)
    def _():
        acc_ref[0] = jnp.zeros((bn, c), jnp.float32)
        acc_ref[1] = jnp.full((bn, c), -jnp.inf, jnp.float32)

    x = x_ref[...]                                   # keep input dtype (no tile cast)

    if total_hw % chunk:
        # Masked tail: lanes past total_hw contribute 0 to the sum and
        # dtype-lowest to the max. (Static: only emitted when needed.)
        lane = jax.lax.broadcasted_iota(jnp.int32, (1, 1, chunk), 2)
        valid = (k * chunk + lane) < total_hw
        if jnp.issubdtype(x.dtype, jnp.floating):
            lowest = jnp.array(jnp.finfo(x.dtype).min, x.dtype)
        else:
            lowest = jnp.array(jnp.iinfo(x.dtype).min, x.dtype)
        x_sum = jnp.where(valid, x, jnp.zeros((), x.dtype))
        x_max = jnp.where(valid, x, lowest)
    else:
        x_sum = x
        x_max = x

    # Partial spatial reductions over the chunk (lane axis), f32 accumulation.
    acc_ref[0] = acc_ref[0] + jnp.sum(x_sum, axis=-1, dtype=jnp.float32)
    acc_ref[1] = jnp.maximum(acc_ref[1],
                             jnp.max(x_max, axis=-1).astype(jnp.float32))

    @pl.when(k == nk - 1)
    def _():
        # Tiny MLP epilogue (runs once per image group, hidden behind DMA).
        # Each pooled vector goes through fc1->relu->fc2 independently: no
        # sublane concat / reshape / row-slice relayouts needed.
        w1t = w1t_ref[...].astype(jnp.float32)        # (C, Ch)
        w2t = w2t_ref[...].astype(jnp.float32)        # (Ch, C)
        avg = acc_ref[0] * jnp.float32(1.0 / total_hw)  # (bn, C)
        mx = acc_ref[1]                                 # (bn, C)
        h_a = jnp.maximum(
            jnp.dot(avg, w1t, preferred_element_type=jnp.float32), 0.0)
        h_m = jnp.maximum(
            jnp.dot(mx, w1t, preferred_element_type=jnp.float32), 0.0)
        out = (jnp.dot(h_a, w2t, preferred_element_type=jnp.float32)
               + jnp.dot(h_m, w2t, preferred_element_type=jnp.float32))
        o_ref[0] = jax.nn.sigmoid(out).astype(o_ref.dtype)


def channel_attention(x, w1, w2, *, bn=None, chunk=None):
    """x: (N, C, H, W); w1: (C//16, C) [fc1.weight]; w2: (C, C//16) [fc2.weight].

    Returns sigmoid channel-attention weights of shape (N, C, 1, 1)."""
    N, C, H, W = x.shape
    Ch = w1.shape[0]
    HW = H * W
    itemsize = x.dtype.itemsize

    vmem_bytes, num_cores = _tpu_params()
    buf_budget, vmem_limit = _budgets(vmem_bytes)

    if bn is None:
        bn = _pick_bn(N, C, HW, itemsize, buf_budget, min_steps=num_cores)
    if chunk is None:
        chunk = _pick_chunk(HW, bn, C, itemsize, buf_budget)
    assert N % bn == 0
    assert chunk == HW or chunk % 128 == 0

    nk = pl.cdiv(HW, chunk)

    x_flat = x.reshape(N, C, HW)   # keep (C, HW) layout — no extra HBM pass
    w1t = w1.T                     # (C, Ch)
    w2t = w2.T                     # (Ch, C)

    kernel = functools.partial(_channel_attention_kernel,
                               total_hw=HW, chunk=chunk)

    cost = pl.CostEstimate(
        flops=int(2 * N * C * HW + 8 * N * C * Ch),
        transcendentals=int(N * C),
        bytes_accessed=int(N * C * HW * itemsize
                           + (w1.size + w2.size) * w1.dtype.itemsize
                           + N * C * itemsize),
    )

    out = pl.pallas_call(
        kernel,
        # (N//bn, bn, C): the output block equals the full array on its last
        # two dims for any bn, so the store stays layout-legal and lane-dense.
        out_shape=jax.ShapeDtypeStruct((N // bn, bn, C), x.dtype),
        grid_spec=pltpu.PrefetchScalarGridSpec(
            num_scalar_prefetch=0,
            grid=(N // bn, nk),                       # reduction (HW) axis last
            in_specs=[
                pl.BlockSpec((bn, C, chunk), lambda n, k: (n, 0, k)),
                pl.BlockSpec((C, Ch), lambda n, k: (0, 0)),   # resident weights
                pl.BlockSpec((Ch, C), lambda n, k: (0, 0)),
            ],
            out_specs=pl.BlockSpec((1, bn, C), lambda n, k: (n, 0, 0)),
            scratch_shapes=[
                pltpu.VMEM((2, bn, C), jnp.float32),  # [running sum; running max]
            ],
        ),
        compiler_params=pltpu.CompilerParams(
            dimension_semantics=("parallel", "arbitrary"),
            vmem_limit_bytes=int(vmem_limit),
        ),
        cost_estimate=cost,
    )(x_flat, w1t, w2t)
    return out.reshape(N, C, 1, 1)


def channel_attention_ref(x, w1, w2):
    """Pure-JAX reference matching the PyTorch forward semantics."""
    avg = jnp.mean(x, axis=(2, 3))                     # (N, C)
    mx = jnp.max(x, axis=(2, 3))                       # (N, C)

    def mlp(v):
        h = jnp.maximum(v @ w1.T, 0.0)                 # (N, Ch)
        return h @ w2.T                                # (N, C)

    out = jax.nn.sigmoid(mlp(avg) + mlp(mx))
    return out[:, :, None, None]


if __name__ == "__main__":
    key = jax.random.PRNGKey(0)
    kx, k1, k2, kx2, kx3 = jax.random.split(key, 5)

    # The module hardcodes in_planes // 16, so C >= 16.
    N, C, H, W = 2, 32, 16, 16
    Ch = C // 16
    x = jax.random.normal(kx, (N, C, H, W), dtype=jnp.float32)
    w1 = 0.1 * jax.random.normal(k1, (Ch, C), dtype=jnp.float32)   # fc1.weight
    w2 = 0.1 * jax.random.normal(k2, (C, Ch), dtype=jnp.float32)   # fc2.weight

    out = jax.block_until_ready(channel_attention(x, w1, w2))
    ref = channel_attention_ref(x, w1, w2)
    assert out.shape == (N, C, 1, 1)
    assert jnp.allclose(out, ref, atol=1e-5, rtol=1e-5), (
        f"max abs err {jnp.max(jnp.abs(out - ref))}")

    # bn=8 batching + evenly tiled spatial reduction (HW=512 -> 4 chunks of 128).
    N2, H2, W2 = 8, 16, 32
    x2 = jax.random.normal(kx2, (N2, C, H2, W2), dtype=jnp.float32)
    out2 = jax.block_until_ready(channel_attention(x2, w1, w2, bn=8, chunk=128))
    ref2 = channel_attention_ref(x2, w1, w2)
    assert out2.shape == (N2, C, 1, 1)
    assert jnp.allclose(out2, ref2, atol=1e-5, rtol=1e-5), (
        f"max abs err {jnp.max(jnp.abs(out2 - ref2))}")

    # Masked-tail path: HW=300 has no 128-multiple divisor -> cdiv grid + mask.
    # Also exercises bn=1 (the per-core split the auto-picker uses on v7x).
    N3, H3, W3 = 2, 15, 20
    x3 = jax.random.normal(kx3, (N3, C, H3, W3), dtype=jnp.float32)
    out3 = jax.block_until_ready(channel_attention(x3, w1, w2, bn=1, chunk=128))
    ref3 = channel_attention_ref(x3, w1, w2)
    assert out3.shape == (N3, C, 1, 1)
    assert jnp.allclose(out3, ref3, atol=1e-5, rtol=1e-5), (
        f"max abs err {jnp.max(jnp.abs(out3 - ref3))}")

    print("KERNEL_OK")
</pallas_src>

<mosaic_0001>
module attributes {stable_mosaic.version = 11 : i64} {
  func.func @_channel_attention_kernel(%arg0: i32, %arg1: i32, %arg2: memref<1x32x256xf32, #tpu.memory_space<vmem>>, %arg3: memref<32x2xf32, #tpu.memory_space<vmem>>, %arg4: memref<2x32xf32, #tpu.memory_space<vmem>>, %arg5: memref<1x1x32xf32, #tpu.memory_space<vmem>>, %arg6: memref<2x1x32xf32, #tpu.memory_space<vmem>>) attributes {dimension_semantics = [#tpu.dimension_semantics<parallel>, #tpu.dimension_semantics<arbitrary>], iteration_bounds = array<i64: 2, 1>, scalar_prefetch = 0 : i64, scratch_operands = 1 : i64, tpu.core_type = #tpu.core_type<tc>, window_params = [{transform_indices = @transform_0, window_bounds = array<i64: 1, 32, 256>}, {pipeline_mode = #tpu.pipeline_mode<synchronous>, transform_indices = @transform_1, window_bounds = array<i64: 32, 2>}, {pipeline_mode = #tpu.pipeline_mode<synchronous>, transform_indices = @transform_2, window_bounds = array<i64: 2, 32>}, {transform_indices = @transform_3, window_bounds = array<i64: 1, 1, 32>}]} {
    %c0_i32 = arith.constant 0 : i32
    %0 = arith.cmpi eq, %arg1, %c0_i32 : i32
    %1 = arith.extui %0 : i1 to i32
    %c0_i32_0 = arith.constant 0 : i32
    %2 = arith.cmpi ne, %1, %c0_i32_0 : i32
    scf.if %2 {
      %cst_17 = arith.constant 0.000000e+00 : f32
      %21 = vector.broadcast %cst_17 : f32 to vector<1x32xf32>
      %c0_18 = arith.constant 0 : index
      %c0_19 = arith.constant 0 : index
      %c0_20 = arith.constant 0 : index
      %22 = vector.load %arg6[%c0_18, %c0_19, %c0_20] : memref<2x1x32xf32, #tpu.memory_space<vmem>>, vector<1x1x32xf32>
      %23 = vector.shape_cast %22 : vector<1x1x32xf32> to vector<1x32xf32>
      %24 = vector.shape_cast %21 : vector<1x32xf32> to vector<1x1x32xf32>
      tpu.vector_store %arg6[%c0_18, %c0_19, %c0_20], %24 {strides = array<i32>} : memref<2x1x32xf32, #tpu.memory_space<vmem>>, vector<1x1x32xf32>,
      %cst_21 = arith.constant 0xFF800000 : f32
      %25 = vector.broadcast %cst_21 : f32 to vector<1x32xf32>
      %c1_22 = arith.constant 1 : index
      %c0_23 = arith.constant 0 : index
      %c0_24 = arith.constant 0 : index
      %26 = vector.load %arg6[%c1_22, %c0_23, %c0_24] : memref<2x1x32xf32, #tpu.memory_space<vmem>>, vector<1x1x32xf32>
      %27 = vector.shape_cast %26 : vector<1x1x32xf32> to vector<1x32xf32>
      %28 = vector.shape_cast %25 : vector<1x32xf32> to vector<1x1x32xf32>
      tpu.vector_store %arg6[%c1_22, %c0_23, %c0_24], %28 {strides = array<i32>} : memref<2x1x32xf32, #tpu.memory_space<vmem>>, vector<1x1x32xf32>,
    } else {
    }
    %c0 = arith.constant 0 : index
    %c0_1 = arith.constant 0 : index
    %c0_2 = arith.constant 0 : index
    %3 = vector.load %arg2[%c0, %c0_1, %c0_2] : memref<1x32x256xf32, #tpu.memory_space<vmem>>, vector<1x32x256xf32>
    %c0_3 = arith.constant 0 : index
    %c0_4 = arith.constant 0 : index
    %c0_5 = arith.constant 0 : index
    %4 = vector.load %arg6[%c0_3, %c0_4, %c0_5] : memref<2x1x32xf32, #tpu.memory_space<vmem>>, vector<1x1x32xf32>
    %5 = vector.shape_cast %4 : vector<1x1x32xf32> to vector<1x32xf32>
    %cst = arith.constant dense<0.000000e+00> : vector<1x32xf32>
    %6 = vector.multi_reduction <add>, %3, %cst [2] : vector<1x32x256xf32> to vector<1x32xf32>
    %7 = arith.addf %5, %6 : vector<1x32xf32>
    %c0_6 = arith.constant 0 : index
    %c0_7 = arith.constant 0 : index
    %c0_8 = arith.constant 0 : index
    %8 = vector.load %arg6[%c0_6, %c0_7, %c0_8] : memref<2x1x32xf32, #tpu.memory_space<vmem>>, vector<1x1x32xf32>
    %9 = vector.shape_cast %8 : vector<1x1x32xf32> to vector<1x32xf32>
    %10 = vector.shape_cast %7 : vector<1x32xf32> to vector<1x1x32xf32>
    tpu.vector_store %arg6[%c0_6, %c0_7, %c0_8], %10 {strides = array<i32>} : memref<2x1x32xf32, #tpu.memory_space<vmem>>, vector<1x1x32xf32>,
    %c1 = arith.constant 1 : index
    %c0_9 = arith.constant 0 : index
    %c0_10 = arith.constant 0 : index
    %11 = vector.load %arg6[%c1, %c0_9, %c0_10] : memref<2x1x32xf32, #tpu.memory_space<vmem>>, vector<1x1x32xf32>
    %12 = vector.shape_cast %11 : vector<1x1x32xf32> to vector<1x32xf32>
    %cst_11 = arith.constant dense<0xFF800000> : vector<1x32xf32>
    %13 = vector.multi_reduction <maximumf>, %3, %cst_11 [2] : vector<1x32x256xf32> to vector<1x32xf32>
    %14 = arith.maximumf %12, %13 : vector<1x32xf32>
    %c1_12 = arith.constant 1 : index
    %c0_13 = arith.constant 0 : index
    %c0_14 = arith.constant 0 : index
    %15 = vector.load %arg6[%c1_12, %c0_13, %c0_14] : memref<2x1x32xf32, #tpu.memory_space<vmem>>, vector<1x1x32xf32>
    %16 = vector.shape_cast %15 : vector<1x1x32xf32> to vector<1x32xf32>
    %17 = vector.shape_cast %14 : vector<1x32xf32> to vector<1x1x32xf32>
    tpu.vector_store %arg6[%c1_12, %c0_13, %c0_14], %17 {strides = array<i32>} : memref<2x1x32xf32, #tpu.memory_space<vmem>>, vector<1x1x32xf32>,
    %c0_i32_15 = arith.constant 0 : i32
    %18 = arith.cmpi eq, %arg1, %c0_i32_15 : i32
    %19 = arith.extui %18 : i1 to i32
    %c0_i32_16 = arith.constant 0 : i32
    %20 = arith.cmpi ne, %19, %c0_i32_16 : i32
    scf.if %20 {
      %c0_17 = arith.constant 0 : index
      %c0_18 = arith.constant 0 : index
      %21 = vector.load %arg3[%c0_17, %c0_18] : memref<32x2xf32, #tpu.memory_space<vmem>>, vector<32x2xf32>
      %c0_19 = arith.constant 0 : index
      %c0_20 = arith.constant 0 : index
      %22 = vector.load %arg4[%c0_19, %c0_20] : memref<2x32xf32, #tpu.memory_space<vmem>>, vector<2x32xf32>
      %c0_21 = arith.constant 0 : index
      %c0_22 = arith.constant 0 : index
      %c0_23 = arith.constant 0 : index
      %23 = vector.load %arg6[%c0_21, %c0_22, %c0_23] : memref<2x1x32xf32, #tpu.memory_space<vmem>>, vector<1x1x32xf32>
      %24 = vector.shape_cast %23 : vector<1x1x32xf32> to vector<1x32xf32>
      %cst_24 = arith.constant 3.906250e-03 : f32
      %25 = vector.broadcast %cst_24 : f32 to vector<1x32xf32>
      %26 = arith.mulf %24, %25 : vector<1x32xf32>
      %c1_25 = arith.constant 1 : index
      %c0_26 = arith.constant 0 : index
      %c0_27 = arith.constant 0 : index
      %27 = vector.load %arg6[%c1_25, %c0_26, %c0_27] : memref<2x1x32xf32, #tpu.memory_space<vmem>>, vector<1x1x32xf32>
      %28 = vector.shape_cast %27 : vector<1x1x32xf32> to vector<1x32xf32>
      %cst_28 = arith.constant dense<0.000000e+00> : vector<1x2xf32>
      %29 = tpu.matmul %26, %21, %cst_28 {dimension_numbers = #tpu.dot_dimension_numbers<[1], [0], [0], [1], [0, 0, 1, 1], [], []>} : vector<1x32xf32>, vector<32x2xf32>, vector<1x2xf32> -> vector<1x2xf32>
      %cst_29 = arith.constant 0.000000e+00 : f32
      %30 = vector.broadcast %cst_29 : f32 to vector<1x2xf32>
      %31 = arith.maximumf %29, %30 : vector<1x2xf32>
      %cst_30 = arith.constant dense<0.000000e+00> : vector<1x2xf32>
      %32 = tpu.matmul %28, %21, %cst_30 {dimension_numbers = #tpu.dot_dimension_numbers<[1], [0], [0], [1], [0, 0, 1, 1], [], []>} : vector<1x32xf32>, vector<32x2xf32>, vector<1x2xf32> -> vector<1x2xf32>
      %cst_31 = arith.constant 0.000000e+00 : f32
      %33 = vector.broadcast %cst_31 : f32 to vector<1x2xf32>
      %34 = arith.maximumf %32, %33 : vector<1x2xf32>
      %cst_32 = arith.constant dense<0.000000e+00> : vector<1x32xf32>
      %35 = tpu.matmul %31, %22, %cst_32 {dimension_numbers = #tpu.dot_dimension_numbers<[1], [0], [0], [1], [0, 0, 1, 1], [], []>} : vector<1x2xf32>, vector<2x32xf32>, vector<1x32xf32> -> vector<1x32xf32>
      %cst_33 = arith.constant dense<0.000000e+00> : vector<1x32xf32>
      %36 = tpu.matmul %34, %22, %cst_33 {dimension_numbers = #tpu.dot_dimension_numbers<[1], [0], [0], [1], [0, 0, 1, 1], [], []>} : vector<1x2xf32>, vector<2x32xf32>, vector<1x32xf32> -> vector<1x32xf32>
      %37 = arith.addf %35, %36 : vector<1x32xf32>
      %38 = arith.negf %37 : vector<1x32xf32>
      %39 = math.exp %38 : vector<1x32xf32>
      %cst_34 = arith.constant 1.000000e+00 : f32
      %40 = vector.broadcast %cst_34 : f32 to vector<1x32xf32>
      %41 = arith.addf %40, %39 : vector<1x32xf32>
      %42 = arith.divf %40, %41 : vector<1x32xf32>
      %c0_35 = arith.constant 0 : index
      %c0_36 = arith.constant 0 : index
      %c0_37 = arith.constant 0 : index
      %43 = vector.load %arg5[%c0_35, %c0_36, %c0_37] : memref<1x1x32xf32, #tpu.memory_space<vmem>>, vector<1x1x32xf32>
      %44 = vector.shape_cast %43 : vector<1x1x32xf32> to vector<1x32xf32>
      %45 = vector.shape_cast %42 : vector<1x32xf32> to vector<1x1x32xf32>
      tpu.vector_store %arg5[%c0_35, %c0_36, %c0_37], %45 {strides = array<i32>} : memref<1x1x32xf32, #tpu.memory_space<vmem>>, vector<1x1x32xf32>,
    } else {
    }
    return
  }
  func.func @transform_0(%arg0: i32, %arg1: i32) -> (i32, i32, i32) {
    %c0_i32 = arith.constant 0 : i32
    %c0_i32_0 = arith.constant 0 : i32
    return %arg0, %c0_i32, %arg1 : i32, i32, i32
  }
  func.func @transform_1(%arg0: i32, %arg1: i32) -> (i32, i32) {
    %c0_i32 = arith.constant 0 : i32
    %c0_i32_0 = arith.constant 0 : i32
    %c0_i32_1 = arith.constant 0 : i32
    return %c0_i32, %c0_i32_0 : i32, i32
  }
  func.func @transform_2(%arg0: i32, %arg1: i32) -> (i32, i32) {
    %c0_i32 = arith.constant 0 : i32
    %c0_i32_0 = arith.constant 0 : i32
    %c0_i32_1 = arith.constant 0 : i32
    return %c0_i32, %c0_i32_0 : i32, i32
  }
  func.func @transform_3(%arg0: i32, %arg1: i32) -> (i32, i32, i32) {
    %c0_i32 = arith.constant 0 : i32
    %c0_i32_0 = arith.constant 0 : i32
    %c0_i32_1 = arith.constant 0 : i32
    return %arg0, %c0_i32, %c0_i32_0 : i32, i32, i32
  }
}

</mosaic_0001>

<llo_original>
// kernel: tpu_custom_call.1
$region0: #{tpu_custom_call.1}
  #allocation0 [shape = 'u32[]', space=smem, size = 0x4, offset = 0x4, fixed_abs, tag = 'smem constant byte address 0x4 - core index']
  #allocation1 [shape = 'u32[144,128]{1,0:T(1,128)}', space=vmem, size = 0x12000, scoped, tag = 'internal scratch']
  #allocation2 [shape = 'f32[2,1,32]{2,1,0:T(1,128)}', space=vmem, size = 0x400, scoped, tag = 'scratch operand']
  %s0 = inlined_call_operand.hbm [shape: f32[2,32,256], index: 0, kind: input, shape index: {}]
  %s1 = inlined_call_operand.vmem [shape: f32[32,2], index: 1, kind: input, shape index: {}]
  %s2 = inlined_call_operand.vmem [shape: f32[2,32], index: 2, kind: input, shape index: {}]
  %s3 = inlined_call_operand.hbm [shape: f32[2,1,32], index: 3, kind: output, shape index: {}]
  %s4 = sld [smem:[#allocation0]]
  $region57: #{tpu_custom_call.1} parent=0
    _
  %s6 = ssub.s32 1, %s4
  %s7 = scalar_select 0, %s6, %s4
  $region1: #{tpu_custom_call.1} parent=0
    #allocation3 [shape = 'u8[65536]{0}', space=vmem, size = 0x10000, scoped, tag = 'input window, operand 0']
    #allocation4 [shape = 's32[2]{0}', space=sflag, size = 0x8, scoped, tag = 'scoped memory for tpu_custom_call.1']
    #allocation5 [shape = 's32[2]{0}', space=sflag, size = 0x8, scoped, tag = 'scoped memory for tpu_custom_call.1']
    #allocation6 [shape = 'u8[1024]{0}', space=vmem, size = 0x400, scoped, tag = 'output window, operand 0']
    %8 = vsyncpa [#allocation4], 0
    %s9 = scalar_lea.sflag [#allocation4], 1
    %10 = vsyncpa %s9, 0
    %11 = vsyncpa [#allocation5], 0
    %s12 = scalar_lea.sflag [#allocation5], 1
    %13 = vsyncpa %s12, 0
    loop: start=0, step=1, limit=4
    $region2: #{tpu_custom_call.1} parent=1 // loop_pre_header
      _
    $region3: #{tpu_custom_call.1} parent=1 // loop_header
      %s15 = sphi 0, %s19
      %p16 = scmp.ge.s32.totalorder %s15, 4
      %s22 = sphi 0, %s34
      %s23 = sphi 0, %s30
      %s24 = sphi 0, %s22
      %s25 = sphi 0, %s23
      %s26 = sphi 0, %s24
      %s27 = sphi 0, %s25
      %s39 = sphi 0, %s41
      %s42 = sphi 0, %s39
      %s43 = sphi 0, %s42
      %s59 = sphi 0, %s43
      %s63 = sphi 0, %s63
      %s65 = sphi 0, %s63
      %s66 = sphi 0, %s65
      %s80 = sphi 0, %s66
      %s84 = sphi 0, %s84
      %s86 = sphi 0, %s84
      %s87 = sphi 0, %s86
      %s101 = sphi 0, %s87
      %s107 = sphi 0, %s109
      %s110 = sphi 0, %s107
      %s111 = sphi 0, %s110
      %s127 = sphi 0, %s111
    $region4: #{tpu_custom_call.1} parent=1 // loop_header_branch
      %18 = sbr.rel (%p16) target = $region8
    $region5: #{tpu_custom_call.1} parent=1 // loop_body
      %s20 = ssub.s32 %s15, 1
      %s21 = ssub.s32 %s15, 2
      %s28 = sadd.s32 1, %s23
      %p29 = scmp.ge.s32.totalorder %s28, 1
      %s30 = scalar_select %p29, 0, %s28
      %s31 = sadd.s32 1, %s22
      %s32 = scalar_select %p29, %s31, %s22
      %p33 = scmp.ge.s32.totalorder %s32, 2
      %s34 = scalar_select %p33, 0, %s32
      %s35 = ssub.s32 %s22, %s34
      %s36 = ssub.s32 %s23, %s30
      %s37 = sor.u32 %s35, %s36
      %p38 = scmp.eq.s32.totalorder %s37, 0
      %s40 = sadd.s32 %s39, 1
      %s41 = scalar_select %p38, %s39, %s40
      %p44 = pneg %p38
      %p45 = scmp.eq.s32.totalorder %s15, 1
      %p46 = por %p44, %p45
      %p47 = scmp.ne.s32.totalorder %s39, %s42
      %p48 = scmp.eq.s32.totalorder %s15, 0
      %p49 = por %p47, %p48
      %p50 = scmp.ne.s32.totalorder %s39, %s42
      %p51 = scmp.eq.s32.totalorder %s20, 1
      %p52 = por %p50, %p51
      %p53 = scmp.ne.s32.totalorder %s42, %s43
      %p54 = scmp.eq.s32.totalorder %s20, 0
      %p55 = por %p53, %p54
      %p56 = scmp.ne.s32.totalorder %s42, %s43
      %p57 = scmp.eq.s32.totalorder %s21, 1
      %p58 = por %p56, %p57
      %p60 = scmp.ne.s32.totalorder %s43, %s59
      %p61 = scmp.eq.s32.totalorder %s21, 0
      %p62 = por %p60, %p61
      %s64 = sadd.s32 %s63, 1
      %p67 = scmp.eq.s32.totalorder %s15, 1
      %p68 = scmp.ne.s32.totalorder %s63, %s65
      %p69 = scmp.eq.s32.totalorder %s15, 0
      %p70 = por %p68, %p69
      %p71 = scmp.ne.s32.totalorder %s63, %s65
      %p72 = scmp.eq.s32.totalorder %s20, 1
      %p73 = por %p71, %p72
      %p74 = scmp.ne.s32.totalorder %s65, %s66
      %p75 = scmp.eq.s32.totalorder %s20, 0
      %p76 = por %p74, %p75
      %p77 = scmp.ne.s32.totalorder %s65, %s66
      %p78 = scmp.eq.s32.totalorder %s21, 1
      %p79 = por %p77, %p78
      %p81 = scmp.ne.s32.totalorder %s66, %s80
      %p82 = scmp.eq.s32.totalorder %s21, 0
      %p83 = por %p81, %p82
      %s85 = sadd.s32 %s84, 1
      %p88 = scmp.eq.s32.totalorder %s15, 1
      %p89 = scmp.ne.s32.totalorder %s84, %s86
      %p90 = scmp.eq.s32.totalorder %s15, 0
      %p91 = por %p89, %p90
      %p92 = scmp.ne.s32.totalorder %s84, %s86
      %p93 = scmp.eq.s32.totalorder %s20, 1
      %p94 = por %p92, %p93
      %p95 = scmp.ne.s32.totalorder %s86, %s87
      %p96 = scmp.eq.s32.totalorder %s20, 0
      %p97 = por %p95, %p96
      %p98 = scmp.ne.s32.totalorder %s86, %s87
      %p99 = scmp.eq.s32.totalorder %s21, 1
      %p100 = por %p98, %p99
      %p102 = scmp.ne.s32.totalorder %s87, %s101
      %p103 = scmp.eq.s32.totalorder %s21, 0
      %p104 = por %p102, %p103
      %s105 = ssub.s32 %s22, %s34
      %p106 = scmp.eq.s32.totalorder %s105, 0
      %s108 = sadd.s32 %s107, 1
      %s109 = scalar_select %p106, %s107, %s108
      %p112 = pneg %p106
      %p113 = scmp.eq.s32.totalorder %s15, 1
      %p114 = por %p112, %p113
      %p115 = scmp.ne.s32.totalorder %s107, %s110
      %p116 = scmp.eq.s32.totalorder %s15, 0
      %p117 = por %p115, %p116
      %p118 = scmp.ne.s32.totalorder %s107, %s110
      %p119 = scmp.eq.s32.totalorder %s20, 1
      %p120 = por %p118, %p119
      %p121 = scmp.ne.s32.totalorder %s110, %s111
      %p122 = scmp.eq.s32.totalorder %s20, 0
      %p123 = por %p121, %p122
      %p124 = scmp.ne.s32.totalorder %s110, %s111
      %p125 = scmp.eq.s32.totalorder %s21, 1
      %p126 = por %p124, %p125
      %p128 = scmp.ne.s32.totalorder %s111, %s127
      %p129 = scmp.eq.s32.totalorder %s21, 0
      %p130 = por %p128, %p129
      %p131 = scmp.le.s32.totalorder 1, %s15
      %p132 = scmp.lt.s32.totalorder %s15, 3
      %p133 = pnand %p131, %p132
      %p134 = pneg %p133
      // Predicated region
      $region9: #{tpu_custom_call.1} parent=5 // pred_check
        _
      $region10: #{tpu_custom_call.1} parent=5 // pred_check_branch
        %136 = sbr.rel (%p133) target = $region12
      $region11: #{tpu_custom_call.1} parent=5 // pred_region
        %s137 = ssub.s32 %s15, 1
        // Predicated region
        $region13: #{tpu_custom_call.1} parent=11 // pred_check
          %p138 = pneg %p76
        $region14: #{tpu_custom_call.1} parent=11 // pred_check_branch
          %140 = sbr.rel (%p138) target = $region16
        $region15: #{tpu_custom_call.1} parent=11 // pred_region
          _
        $region16: #{tpu_custom_call.1} parent=11 // pred_fallthru
          _
        // Predicated region
        $region17: #{tpu_custom_call.1} parent=11 // pred_check
          %p141 = pneg %p97
        $region18: #{tpu_custom_call.1} parent=11 // pred_check_branch
          %143 = sbr.rel (%p141) target = $region20
        $region19: #{tpu_custom_call.1} parent=11 // pred_region
          _
        $region20: #{tpu_custom_call.1} parent=11 // pred_fallthru
          _
      $region12: #{tpu_custom_call.1} parent=5 // pred_fallthru
        _
      %p144 = scmp.lt.s32.totalorder %s15, 2
      // Predicated region
      $region21: #{tpu_custom_call.1} parent=5 // pred_check
        %p145 = pneg %p144
      $region22: #{tpu_custom_call.1} parent=5 // pred_check_branch
        %147 = sbr.rel (%p145) target = $region24
      $region23: #{tpu_custom_call.1} parent=5 // pred_region
        // Predicated region
        $region25: #{tpu_custom_call.1} parent=23 // pred_check
          %p148 = pneg %p49
        $region26: #{tpu_custom_call.1} parent=23 // pred_check_branch
          %150 = sbr.rel (%p148) target = $region28
        $region27: #{tpu_custom_call.1} parent=23 // pred_region
          %s151 = sand.u32 %s39, 1
          %s152 = scalar_lea.sflag [#allocation4], %s151
          %s153 = sand.u32 %s39, 1
          %s154 = smul.addr %s153, 64
          %s155 = scalar_lea.vmem [#allocation3], %s154
          %s156 = smul.u32 2, %s23
          %s158 = ssub.s32 1024, 1024
          %159 = vsyncadd %s152, %s158
          %s160 = smul.addr %s22, 8
          %s161 = sadd.s32 %s156, %s160
          %s162 = smul.addr %s161, 128
          %s163 = scalar_lea.hbm %s0, %s162
          %s164 = sshll.u32 %s155, 4
          %s165 = int_to_ptr.vmem [resolvable:$true] %s164
          %170 = dma.hbm_to_vmem [thread:$0]  %s163, 1024, %s165, %s152, 256, 256, 16
        $region28: #{tpu_custom_call.1} parent=23 // pred_fallthru
          _
      $region24: #{tpu_custom_call.1} parent=5 // pred_fallthru
        _
      %p171 = scmp.le.s32.totalorder 1, %s15
      %p172 = scmp.lt.s32.totalorder %s15, 3
      %p173 = pnand %p171, %p172
      %p174 = pneg %p173
      // Predicated region
      $region29: #{tpu_custom_call.1} parent=5 // pred_check
        _
      $region30: #{tpu_custom_call.1} parent=5 // pred_check_branch
        %176 = sbr.rel (%p173) target = $region32
      $region31: #{tpu_custom_call.1} parent=5 // pred_region
        %s177 = ssub.s32 %s15, 1
        %s178 = sand.u32 %s42, 1
        %s179 = scalar_lea.sflag [#allocation4], %s178
        %s180 = sand.u32 %s42, 1
        %s181 = smul.addr %s180, 64
        %s182 = scalar_lea.vmem [#allocation3], %s181
        // Predicated region
        $region33: #{tpu_custom_call.1} parent=31 // pred_check
          %p183 = pneg %p55
        $region34: #{tpu_custom_call.1} parent=31 // pred_check_branch
          %185 = sbr.rel (%p183) target = $region36
        $region35: #{tpu_custom_call.1} parent=31 // pred_region
          %186 = dma.done %s179, 1024
        $region36: #{tpu_custom_call.1} parent=31 // pred_fallthru
          _
        %s187 = sand.u32 %s42, 1
        %s188 = scalar_lea.sflag [#allocation4], %s187
        %s189 = sand.u32 %s42, 1
        %s190 = smul.addr %s189, 64
        %s191 = scalar_lea.vmem [#allocation3], %s190
        %p192 = pneg %p55
        %p193 = pneg %p52
        %p194 = pneg %p76
        %p195 = pneg %p73
        %p196 = pneg %p97
        %p197 = pneg %p94
        %p198 = pneg %p123
        %p199 = pneg %p120
        %s200 = sand.u32 %s110, 1
        %s201 = scalar_lea.sflag [#allocation5], %s200
        %s202 = sand.u32 %s110, 1
        %s203 = scalar_lea.vmem [#allocation6], %s202
        %s204 = smul.u32 2, %s25
        %p205 = scmp.eq.s32.totalorder %s25, 0
        // Predicated region
        $region37: #{tpu_custom_call.1} parent=31 // pred_check
          %p206 = pneg %p205
        $region38: #{tpu_custom_call.1} parent=31 // pred_check_branch
          %208 = sbr.rel (%p206) target = $region40
        $region39: #{tpu_custom_call.1} parent=31 // pred_region
          %vm209 = vcmask 253952
          %210 = vst.msk [vmem:[#allocation2] sm:$0x1] %vm209, 0.0
          %s211 = scalar_lea.vmem [#allocation2], 1
          %212 = vst.msk [vmem:[%s211] sm:$0x1] %vm209, -inf
        $region40: #{tpu_custom_call.1} parent=31 // pred_fallthru
          _
        %v213 = vld [vmem:[%s182] sm:$0xff]
        %v214 = vld [vmem:[%s182 + $0x8] sm:$0xff]
        %v215 = vld [vmem:[%s182 + $0x10] sm:$0xff]
        %v216 = vld [vmem:[%s182 + $0x18] sm:$0xff]
        %v217 = vld [vmem:[%s182 + $0x20] sm:$0xff]
        %v218 = vld [vmem:[%s182 + $0x28] sm:$0xff]
        %v219 = vld [vmem:[%s182 + $0x30] sm:$0xff]
        %v220 = vld [vmem:[%s182 + $0x38] sm:$0xff]
        %v221 = vld [vmem:[#allocation2] sm:$0x1]
        %v222 = vadd.f32 %v213, %v214
        %223 = vadd.xlane.f32.xlu0 %v222
        %v224 = vpop.xlane.xlu0 %223
        %v225 = vadd.f32 %v215, %v216
        %226 = vadd.xlane.f32.xlu0 %v225
        %v227 = vpop.xlane.xlu0 %226
        %v228 = vadd.f32 %v217, %v218
        %229 = vadd.xlane.f32.xlu0 %v228
        %v230 = vpop.xlane.xlu0 %229
        %v231 = vadd.f32 %v219, %v220
        %232 = vadd.xlane.f32.xlu0 %v231
        %v233 = vpop.xlane.xlu0 %232
        %v238 = vlaneseq
        %v239 = vshrl.u32 %v238, 7
        %v240 = vsub.s32 0, %v239
        %v241 = vrot.slane %v224, %v240
        %v242 = vlaneseq
        %v243 = vshrl.u32 %v242, 7
        %v244 = vsub.s32 1, %v243
        %v245 = vrot.slane %v224, %v244
        %v246 = vlaneseq
        %v247 = vshrl.u32 %v246, 7
        %v248 = vsub.s32 2, %v247
        %v249 = vrot.slane %v224, %v248
        %v250 = vlaneseq
        %v251 = vshrl.u32 %v250, 7
        %v252 = vsub.s32 3, %v251
        %v253 = vrot.slane %v224, %v252
        %v254 = vlaneseq
        %v255 = vshrl.u32 %v254, 7
        %v256 = vsub.s32 4, %v255
        %v257 = vrot.slane %v224, %v256
        %v258 = vlaneseq
        %v259 = vshrl.u32 %v258, 7
        %v260 = vsub.s32 5, %v259
        %v261 = vrot.slane %v224, %v260
        %v262 = vlaneseq
        %v263 = vshrl.u32 %v262, 7
        %v264 = vsub.s32 6, %v263
        %v265 = vrot.slane %v224, %v264
        %v266 = vlaneseq
        %v267 = vshrl.u32 %v266, 7
        %v268 = vsub.s32 7, %v267
        %v269 = vrot.slane %v224, %v268
        %v270 = vlaneseq
        %v271 = vshrl.u32 %v270, 7
        %v272 = vsub.s32 0, %v271
        %v273 = vrot.slane %v227, %v272
        %v274 = vlaneseq
        %v275 = vshrl.u32 %v274, 7
        %v276 = vsub.s32 1, %v275
        %v277 = vrot.slane %v227, %v276
        %v278 = vlaneseq
        %v279 = vshrl.u32 %v278, 7
        %v280 = vsub.s32 2, %v279
        %v281 = vrot.slane %v227, %v280
        %v282 = vlaneseq
        %v283 = vshrl.u32 %v282, 7
        %v284 = vsub.s32 3, %v283
        %v285 = vrot.slane %v227, %v284
        %v286 = vlaneseq
        %v287 = vshrl.u32 %v286, 7
        %v288 = vsub.s32 4, %v287
        %v289 = vrot.slane %v227, %v288
        %v290 = vlaneseq
        %v291 = vshrl.u32 %v290, 7
        %v292 = vsub.s32 5, %v291
        %v293 = vrot.slane %v227, %v292
        %v294 = vlaneseq
        %v295 = vshrl.u32 %v294, 7
        %v296 = vsub.s32 6, %v295
        %v297 = vrot.slane %v227, %v296
        %v298 = vlaneseq
        %v299 = vshrl.u32 %v298, 7
        %v300 = vsub.s32 7, %v299
        %v301 = vrot.slane %v227, %v300
        %v302 = vlaneseq
        %v303 = vshrl.u32 %v302, 7
        %v304 = vsub.s32 0, %v303
        %v305 = vrot.slane %v230, %v304
        %v306 = vlaneseq
        %v307 = vshrl.u32 %v306, 7
        %v308 = vsub.s32 1, %v307
        %v309 = vrot.slane %v230, %v308
        %v310 = vlaneseq
        %v311 = vshrl.u32 %v310, 7
        %v312 = vsub.s32 2, %v311
        %v313 = vrot.slane %v230, %v312
        %v314 = vlaneseq
        %v315 = vshrl.u32 %v314, 7
        %v316 = vsub.s32 3, %v315
        %v317 = vrot.slane %v230, %v316
        %v318 = vlaneseq
        %v319 = vshrl.u32 %v318, 7
        %v320 = vsub.s32 4, %v319
        %v321 = vrot.slane %v230, %v320
        %v322 = vlaneseq
        %v323 = vshrl.u32 %v322, 7
        %v324 = vsub.s32 5, %v323
        %v325 = vrot.slane %v230, %v324
        %v326 = vlaneseq
        %v327 = vshrl.u32 %v326, 7
        %v328 = vsub.s32 6, %v327
        %v329 = vrot.slane %v230, %v328
        %v330 = vlaneseq
        %v331 = vshrl.u32 %v330, 7
        %v332 = vsub.s32 7, %v331
        %v333 = vrot.slane %v230, %v332
        %v334 = vlaneseq
        %v335 = vshrl.u32 %v334, 7
        %v336 = vsub.s32 0, %v335
        %v337 = vrot.slane %v233, %v336
        %v338 = vlaneseq
        %v339 = vshrl.u32 %v338, 7
        %v340 = vsub.s32 1, %v339
        %v341 = vrot.slane %v233, %v340
        %v342 = vlaneseq
        %v343 = vshrl.u32 %v342, 7
        %v344 = vsub.s32 2, %v343
        %v345 = vrot.slane %v233, %v344
        %v346 = vlaneseq
        %v347 = vshrl.u32 %v346, 7
        %v348 = vsub.s32 3, %v347
        %v349 = vrot.slane %v233, %v348
        %v350 = vlaneseq
        %v351 = vshrl.u32 %v350, 7
        %v352 = vsub.s32 4, %v351
        %v353 = vrot.slane %v233, %v352
        %v354 = vlaneseq
        %v355 = vshrl.u32 %v354, 7
        %v356 = vsub.s32 5, %v355
        %v357 = vrot.slane %v233, %v356
        %v358 = vlaneseq
        %v359 = vshrl.u32 %v358, 7
        %v360 = vsub.s32 6, %v359
        %v361 = vrot.slane %v233, %v360
        %v362 = vlaneseq
        %v363 = vshrl.u32 %v362, 7
        %v364 = vsub.s32 7, %v363
        %v365 = vrot.slane %v233, %v364
        %v366 = vcombine.low %v241, %v245
        %v367 = vcombine.low %v249, %v253
        %v368 = vcombine.low %v257, %v261
        %v369 = vcombine.low %v265, %v269
        %v371 = vunpack.c.l.s4 1966171168
        %v372 = vunpack.c.0.s8 %v371
        %v373 = vlaneseq
        %v374 = vshrl.u32 %v373, 7
        %v375 = vsub.s32 %v372, %v374
        %v376 = vrot.slane %v366, %v375
        %v378 = vunpack.c.l.s4 1966171168
        %v379 = vunpack.c.0.s8 %v378
        %v380 = vlaneseq
        %v381 = vshrl.u32 %v380, 7
        %v382 = vsub.s32 %v379, %v381
        %v383 = vrot.slane %v367, %v382
        %v385 = vunpack.c.l.s4 1966171168
        %v386 = vunpack.c.0.s8 %v385
        %v387 = vlaneseq
        %v388 = vshrl.u32 %v387, 7
        %v389 = vsub.s32 %v386, %v388
        %v390 = vrot.slane %v368, %v389
        %v392 = vunpack.c.l.s4 1966171168
        %v393 = vunpack.c.0.s8 %v392
        %v394 = vlaneseq
        %v395 = vshrl.u32 %v394, 7
        %v396 = vsub.s32 %v393, %v395
        %v397 = vrot.slane %v369, %v396
        %v398 = vcombine.low %v376, %v383
        %v399 = vcombine.low %v390, %v397
        %v401 = vunpack.c.l.s4 1966171168
        %v402 = vunpack.c.0.s8 %v401
        %v403 = vlaneseq
        %v404 = vshrl.u32 %v403, 7
        %v405 = vsub.s32 %v402, %v404
        %v406 = vrot.slane %v398, %v405
        %v408 = vunpack.c.l.s4 1966171168
        %v409 = vunpack.c.0.s8 %v408
        %v410 = vlaneseq
        %v411 = vshrl.u32 %v410, 7
        %v412 = vsub.s32 %v409, %v411
        %v413 = vrot.slane %v399, %v412
        %v414 = vcombine.low %v406, %v413
        %v415 = vcombine.low %v273, %v277
        %v416 = vcombine.low %v281, %v285
        %v417 = vcombine.low %v289, %v293
        %v418 = vcombine.low %v297, %v301
        %v420 = vunpack.c.l.s4 1966171168
        %v421 = vunpack.c.0.s8 %v420
        %v422 = vlaneseq
        %v423 = vshrl.u32 %v422, 7
        %v424 = vsub.s32 %v421, %v423
        %v425 = vrot.slane %v415, %v424
        %v427 = vunpack.c.l.s4 1966171168
        %v428 = vunpack.c.0.s8 %v427
        %v429 = vlaneseq
        %v430 = vshrl.u32 %v429, 7
        %v431 = vsub.s32 %v428, %v430
        %v432 = vrot.slane %v416, %v431
        %v434 = vunpack.c.l.s4 1966171168
        %v435 = vunpack.c.0.s8 %v434
        %v436 = vlaneseq
        %v437 = vshrl.u32 %v436, 7
        %v438 = vsub.s32 %v435, %v437
        %v439 = vrot.slane %v417, %v438
        %v441 = vunpack.c.l.s4 1966171168
        %v442 = vunpack.c.0.s8 %v441
        %v443 = vlaneseq
        %v444 = vshrl.u32 %v443, 7
        %v445 = vsub.s32 %v442, %v444
        %v446 = vrot.slane %v418, %v445
        %v447 = vcombine.low %v425, %v432
        %v448 = vcombine.low %v439, %v446
        %v450 = vunpack.c.l.s4 1966171168
        %v451 = vunpack.c.0.s8 %v450
        %v452 = vlaneseq
        %v453 = vshrl.u32 %v452, 7
        %v454 = vsub.s32 %v451, %v453
        %v455 = vrot.slane %v447, %v454
        %v457 = vunpack.c.l.s4 1966171168
        %v458 = vunpack.c.0.s8 %v457
        %v459 = vlaneseq
        %v460 = vshrl.u32 %v459, 7
        %v461 = vsub.s32 %v458, %v460
        %v462 = vrot.slane %v448, %v461
        %v463 = vcombine.low %v455, %v462
        %v464 = vcombine.low %v305, %v309
        %v465 = vcombine.low %v313, %v317
        %v466 = vcombine.low %v321, %v325
        %v467 = vcombine.low %v329, %v333
        %v469 = vunpack.c.l.s4 1966171168
        %v470 = vunpack.c.0.s8 %v469
        %v471 = vlaneseq
        %v472 = vshrl.u32 %v471, 7
        %v473 = vsub.s32 %v470, %v472
        %v474 = vrot.slane %v464, %v473
        %v476 = vunpack.c.l.s4 1966171168
        %v477 = vunpack.c.0.s8 %v476
        %v478 = vlaneseq
        %v479 = vshrl.u32 %v478, 7
        %v480 = vsub.s32 %v477, %v479
        %v481 = vrot.slane %v465, %v480
        %v483 = vunpack.c.l.s4 1966171168
        %v484 = vunpack.c.0.s8 %v483
        %v485 = vlaneseq
        %v486 = vshrl.u32 %v485, 7
        %v487 = vsub.s32 %v484, %v486
        %v488 = vrot.slane %v466, %v487
        %v490 = vunpack.c.l.s4 1966171168
        %v491 = vunpack.c.0.s8 %v490
        %v492 = vlaneseq
        %v493 = vshrl.u32 %v492, 7
        %v494 = vsub.s32 %v491, %v493
        %v495 = vrot.slane %v467, %v494
        %v496 = vcombine.low %v474, %v481
        %v497 = vcombine.low %v488, %v495
        %v499 = vunpack.c.l.s4 1966171168
        %v500 = vunpack.c.0.s8 %v499
        %v501 = vlaneseq
        %v502 = vshrl.u32 %v501, 7
        %v503 = vsub.s32 %v500, %v502
        %v504 = vrot.slane %v496, %v503
        %v506 = vunpack.c.l.s4 1966171168
        %v507 = vunpack.c.0.s8 %v506
        %v508 = vlaneseq
        %v509 = vshrl.u32 %v508, 7
        %v510 = vsub.s32 %v507, %v509
        %v511 = vrot.slane %v497, %v510
        %v512 = vcombine.low %v504, %v511
        %v513 = vcombine.low %v337, %v341
        %v514 = vcombine.low %v345, %v349
        %v515 = vcombine.low %v353, %v357
        %v516 = vcombine.low %v361, %v365
        %v518 = vunpack.c.l.s4 1966171168
        %v519 = vunpack.c.0.s8 %v518
        %v520 = vlaneseq
        %v521 = vshrl.u32 %v520, 7
        %v522 = vsub.s32 %v519, %v521
        %v523 = vrot.slane %v513, %v522
        %v525 = vunpack.c.l.s4 1966171168
        %v526 = vunpack.c.0.s8 %v525
        %v527 = vlaneseq
        %v528 = vshrl.u32 %v527, 7
        %v529 = vsub.s32 %v526, %v528
        %v530 = vrot.slane %v514, %v529
        %v532 = vunpack.c.l.s4 1966171168
        %v533 = vunpack.c.0.s8 %v532
        %v534 = vlaneseq
        %v535 = vshrl.u32 %v534, 7
        %v536 = vsub.s32 %v533, %v535
        %v537 = vrot.slane %v515, %v536
        %v539 = vunpack.c.l.s4 1966171168
        %v540 = vunpack.c.0.s8 %v539
        %v541 = vlaneseq
        %v542 = vshrl.u32 %v541, 7
        %v543 = vsub.s32 %v540, %v542
        %v544 = vrot.slane %v516, %v543
        %v545 = vcombine.low %v523, %v530
        %v546 = vcombine.low %v537, %v544
        %v548 = vunpack.c.l.s4 1966171168
        %v549 = vunpack.c.0.s8 %v548
        %v550 = vlaneseq
        %v551 = vshrl.u32 %v550, 7
        %v552 = vsub.s32 %v549, %v551
        %v553 = vrot.slane %v545, %v552
        %v555 = vunpack.c.l.s4 1966171168
        %v556 = vunpack.c.0.s8 %v555
        %v557 = vlaneseq
        %v558 = vshrl.u32 %v557, 7
        %v559 = vsub.s32 %v556, %v558
        %v560 = vrot.slane %v546, %v559
        %v561 = vcombine.low %v553, %v560
        %562 = vset.pattern.permute.xlu0 0
        %563 = vperm.xlu0 %562, %v414
        %v564 = vpop.permute.xlu0 %563
        %565 = vset.pattern.permute.xlu0 0
        %566 = vperm.xlu0 %565, %v463
        %v567 = vpop.permute.xlu0 %566
        %568 = vset.pattern.permute.xlu0 0
        %569 = vperm.xlu0 %568, %v512
        %v570 = vpop.permute.xlu0 %569
        %571 = vset.pattern.permute.xlu0 0
        %572 = vperm.xlu0 %571, %v561
        %v573 = vpop.permute.xlu0 %572
        %v574 = vlaneseq
        %v575 = vand.u32 %v574, 127
        %v576 = vlaneseq
        %v577 = vshrl.u32 %v576, 7
        %v578 = vsub.s32 %v575, %v577
        %v579 = vrot.slane %v564, %v578
        %v580 = vadd.s32 %v575, 4294967288
        %v581 = vlaneseq
        %v582 = vshrl.u32 %v581, 7
        %v583 = vsub.s32 %v580, %v582
        %v584 = vrot.slane %v567, %v583
        %vm585 = vcmask 130112
        %v586 = vsel %vm585, %v584, %v579
        %v587 = vadd.s32 %v575, 4294967280
        %v588 = vlaneseq
        %v589 = vshrl.u32 %v588, 7
        %v590 = vsub.s32 %v587, %v589
        %v591 = vrot.slane %v570, %v590
        %vm592 = vcmask 195712
        %v593 = vsel %vm592, %v591, %v586
        %v594 = vadd.s32 %v575, 4294967272
        %v595 = vlaneseq
        %v596 = vshrl.u32 %v595, 7
        %v597 = vsub.s32 %v594, %v596
        %v598 = vrot.slane %v573, %v597
        %vm599 = vcmask 261312
        %v600 = vsel %vm599, %v598, %v593
        %v602 = vunpack.c.l.s4 1966171168
        %v603 = vunpack.c.0.s8 %v602
        %v604 = vlaneseq
        %v605 = vshrl.u32 %v604, 7
        %v606 = vsub.s32 %v603, %v605
        %v607 = vrot.slane %v600, %v606
        %v609 = vunpack.c.l.s4 1966171168
        %v610 = vunpack.c.0.s8 %v609
        %v611 = vlaneseq
        %v612 = vshrl.u32 %v611, 7
        %v613 = vsub.s32 %v610, %v612
        %v614 = vrot.slane %v607, %v613
        %v616 = vadd.f32 %v221, %v614
        %vm617 = vcmask 253952
        %618 = vst.msk [vmem:[#allocation2] sm:$0x1] %vm617, %v616
        %s619 = scalar_lea.vmem [#allocation2], 1
        %v620 = vld [vmem:[%s619] sm:$0x1]
        %v621 = vmax.f32 %v213, %v214
        %622 = vmax.xlane.f32.xlu0 %v621
        %v623 = vpop.xlane.xlu0 %622
        %v624 = vmax.f32 %v215, %v216
        %625 = vmax.xlane.f32.xlu0 %v624
        %v626 = vpop.xlane.xlu0 %625
        %v627 = vmax.f32 %v217, %v218
        %628 = vmax.xlane.f32.xlu0 %v627
        %v629 = vpop.xlane.xlu0 %628
        %v630 = vmax.f32 %v219, %v220
        %631 = vmax.xlane.f32.xlu0 %v630
        %v632 = vpop.xlane.xlu0 %631
        %v637 = vlaneseq
        %v638 = vshrl.u32 %v637, 7
        %v639 = vsub.s32 0, %v638
        %v640 = vrot.slane %v623, %v639
        %v641 = vlaneseq
        %v642 = vshrl.u32 %v641, 7
        %v643 = vsub.s32 1, %v642
        %v644 = vrot.slane %v623, %v643
        %v645 = vlaneseq
        %v646 = vshrl.u32 %v645, 7
        %v647 = vsub.s32 2, %v646
        %v648 = vrot.slane %v623, %v647
        %v649 = vlaneseq
        %v650 = vshrl.u32 %v649, 7
        %v651 = vsub.s32 3, %v650
        %v652 = vrot.slane %v623, %v651
        %v653 = vlaneseq
        %v654 = vshrl.u32 %v653, 7
        %v655 = vsub.s32 4, %v654
        %v656 = vrot.slane %v623, %v655
        %v657 = vlaneseq
        %v658 = vshrl.u32 %v657, 7
        %v659 = vsub.s32 5, %v658
        %v660 = vrot.slane %v623, %v659
        %v661 = vlaneseq
        %v662 = vshrl.u32 %v661, 7
        %v663 = vsub.s32 6, %v662
        %v664 = vrot.slane %v623, %v663
        %v665 = vlaneseq
        %v666 = vshrl.u32 %v665, 7
        %v667 = vsub.s32 7, %v666
        %v668 = vrot.slane %v623, %v667
        %v669 = vlaneseq
        %v670 = vshrl.u32 %v669, 7
        %v671 = vsub.s32 0, %v670
        %v672 = vrot.slane %v626, %v671
        %v673 = vlaneseq
        %v674 = vshrl.u32 %v673, 7
        %v675 = vsub.s32 1, %v674
        %v676 = vrot.slane %v626, %v675
        %v677 = vlaneseq
        %v678 = vshrl.u32 %v677, 7
        %v679 = vsub.s32 2, %v678
        %v680 = vrot.slane %v626, %v679
        %v681 = vlaneseq
        %v682 = vshrl.u32 %v681, 7
        %v683 = vsub.s32 3, %v682
        %v684 = vrot.slane %v626, %v683
        %v685 = vlaneseq
        %v686 = vshrl.u32 %v685, 7
        %v687 = vsub.s32 4, %v686
        %v688 = vrot.slane %v626, %v687
        %v689 = vlaneseq
        %v690 = vshrl.u32 %v689, 7
        %v691 = vsub.s32 5, %v690
        %v692 = vrot.slane %v626, %v691
        %v693 = vlaneseq
        %v694 = vshrl.u32 %v693, 7
        %v695 = vsub.s32 6, %v694
        %v696 = vrot.slane %v626, %v695
        %v697 = vlaneseq
        %v698 = vshrl.u32 %v697, 7
        %v699 = vsub.s32 7, %v698
        %v700 = vrot.slane %v626, %v699
        %v701 = vlaneseq
        %v702 = vshrl.u32 %v701, 7
        %v703 = vsub.s32 0, %v702
        %v704 = vrot.slane %v629, %v703
        %v705 = vlaneseq
        %v706 = vshrl.u32 %v705, 7
        %v707 = vsub.s32 1, %v706
        %v708 = vrot.slane %v629, %v707
        %v709 = vlaneseq
        %v710 = vshrl.u32 %v709, 7
        %v711 = vsub.s32 2, %v710
        %v712 = vrot.slane %v629, %v711
        %v713 = vlaneseq
        %v714 = vshrl.u32 %v713, 7
        %v715 = vsub.s32 3, %v714
        %v716 = vrot.slane %v629, %v715
        %v717 = vlaneseq
        %v718 = vshrl.u32 %v717, 7
        %v719 = vsub.s32 4, %v718
        %v720 = vrot.slane %v629, %v719
        %v721 = vlaneseq
        %v722 = vshrl.u32 %v721, 7
        %v723 = vsub.s32 5, %v722
        %v724 = vrot.slane %v629, %v723
        %v725 = vlaneseq
        %v726 = vshrl.u32 %v725, 7
        %v727 = vsub.s32 6, %v726
        %v728 = vrot.slane %v629, %v727
        %v729 = vlaneseq
        %v730 = vshrl.u32 %v729, 7
        %v731 = vsub.s32 7, %v730
        %v732 = vrot.slane %v629, %v731
        %v733 = vlaneseq
        %v734 = vshrl.u32 %v733, 7
        %v735 = vsub.s32 0, %v734
        %v736 = vrot.slane %v632, %v735
        %v737 = vlaneseq
        %v738 = vshrl.u32 %v737, 7
        %v739 = vsub.s32 1, %v738
        %v740 = vrot.slane %v632, %v739
        %v741 = vlaneseq
        %v742 = vshrl.u32 %v741, 7
        %v743 = vsub.s32 2, %v742
        %v744 = vrot.slane %v632, %v743
        %v745 = vlaneseq
        %v746 = vshrl.u32 %v745, 7
        %v747 = vsub.s32 3, %v746
        %v748 = vrot.slane %v632, %v747
        %v749 = vlaneseq
        %v750 = vshrl.u32 %v749, 7
        %v751 = vsub.s32 4, %v750
        %v752 = vrot.slane %v632, %v751
        %v753 = vlaneseq
        %v754 = vshrl.u32 %v753, 7
        %v755 = vsub.s32 5, %v754
        %v756 = vrot.slane %v632, %v755
        %v757 = vlaneseq
        %v758 = vshrl.u32 %v757, 7
        %v759 = vsub.s32 6, %v758
        %v760 = vrot.slane %v632, %v759
        %v761 = vlaneseq
        %v762 = vshrl.u32 %v761, 7
        %v763 = vsub.s32 7, %v762
        %v764 = vrot.slane %v632, %v763
        %v765 = vcombine.low %v640, %v644
        %v766 = vcombine.low %v648, %v652
        %v767 = vcombine.low %v656, %v660
        %v768 = vcombine.low %v664, %v668
        %v770 = vunpack.c.l.s4 1966171168
        %v771 = vunpack.c.0.s8 %v770
        %v772 = vlaneseq
        %v773 = vshrl.u32 %v772, 7
        %v774 = vsub.s32 %v771, %v773
        %v775 = vrot.slane %v765, %v774
        %v777 = vunpack.c.l.s4 1966171168
        %v778 = vunpack.c.0.s8 %v777
        %v779 = vlaneseq
        %v780 = vshrl.u32 %v779, 7
        %v781 = vsub.s32 %v778, %v780
        %v782 = vrot.slane %v766, %v781
        %v784 = vunpack.c.l.s4 1966171168
        %v785 = vunpack.c.0.s8 %v784
        %v786 = vlaneseq
        %v787 = vshrl.u32 %v786, 7
        %v788 = vsub.s32 %v785, %v787
        %v789 = vrot.slane %v767, %v788
        %v791 = vunpack.c.l.s4 1966171168
        %v792 = vunpack.c.0.s8 %v791
        %v793 = vlaneseq
        %v794 = vshrl.u32 %v793, 7
        %v795 = vsub.s32 %v792, %v794
        %v796 = vrot.slane %v768, %v795
        %v797 = vcombine.low %v775, %v782
        %v798 = vcombine.low %v789, %v796
        %v800 = vunpack.c.l.s4 1966171168
        %v801 = vunpack.c.0.s8 %v800
        %v802 = vlaneseq
        %v803 = vshrl.u32 %v802, 7
        %v804 = vsub.s32 %v801, %v803
        %v805 = vrot.slane %v797, %v804
        %v807 = vunpack.c.l.s4 1966171168
        %v808 = vunpack.c.0.s8 %v807
        %v809 = vlaneseq
        %v810 = vshrl.u32 %v809, 7
        %v811 = vsub.s32 %v808, %v810
        %v812 = vrot.slane %v798, %v811
        %v813 = vcombine.low %v805, %v812
        %v814 = vcombine.low %v672, %v676
        %v815 = vcombine.low %v680, %v684
        %v816 = vcombine.low %v688, %v692
        %v817 = vcombine.low %v696, %v700
        %v819 = vunpack.c.l.s4 1966171168
        %v820 = vunpack.c.0.s8 %v819
        %v821 = vlaneseq
        %v822 = vshrl.u32 %v821, 7
        %v823 = vsub.s32 %v820, %v822
        %v824 = vrot.slane %v814, %v823
        %v826 = vunpack.c.l.s4 1966171168
        %v827 = vunpack.c.0.s8 %v826
        %v828 = vlaneseq
        %v829 = vshrl.u32 %v828, 7
        %v830 = vsub.s32 %v827, %v829
        %v831 = vrot.slane %v815, %v830
        %v833 = vunpack.c.l.s4 1966171168
        %v834 = vunpack.c.0.s8 %v833
        %v835 = vlaneseq
        %v836 = vshrl.u32 %v835, 7
        %v837 = vsub.s32 %v834, %v836
        %v838 = vrot.slane %v816, %v837
        %v840 = vunpack.c.l.s4 1966171168
        %v841 = vunpack.c.0.s8 %v840
        %v842 = vlaneseq
        %v843 = vshrl.u32 %v842, 7
        %v844 = vsub.s32 %v841, %v843
        %v845 = vrot.slane %v817, %v844
        %v846 = vcombine.low %v824, %v831
        %v847 = vcombine.low %v838, %v845
        %v849 = vunpack.c.l.s4 1966171168
        %v850 = vunpack.c.0.s8 %v849
        %v851 = vlaneseq
        %v852 = vshrl.u32 %v851, 7
        %v853 = vsub.s32 %v850, %v852
        %v854 = vrot.slane %v846, %v853
        %v856 = vunpack.c.l.s4 1966171168
        %v857 = vunpack.c.0.s8 %v856
        %v858 = vlaneseq
        %v859 = vshrl.u32 %v858, 7
        %v860 = vsub.s32 %v857, %v859
        %v861 = vrot.slane %v847, %v860
        %v862 = vcombine.low %v854, %v861
        %v863 = vcombine.low %v704, %v708
        %v864 = vcombine.low %v712, %v716
        %v865 = vcombine.low %v720, %v724
        %v866 = vcombine.low %v728, %v732
        %v868 = vunpack.c.l.s4 1966171168
        %v869 = vunpack.c.0.s8 %v868
        %v870 = vlaneseq
        %v871 = vshrl.u32 %v870, 7
        %v872 = vsub.s32 %v869, %v871
        %v873 = vrot.slane %v863, %v872
        %v875 = vunpack.c.l.s4 1966171168
        %v876 = vunpack.c.0.s8 %v875
        %v877 = vlaneseq
        %v878 = vshrl.u32 %v877, 7
        %v879 = vsub.s32 %v876, %v878
        %v880 = vrot.slane %v864, %v879
        %v882 = vunpack.c.l.s4 1966171168
        %v883 = vunpack.c.0.s8 %v882
        %v884 = vlaneseq
        %v885 = vshrl.u32 %v884, 7
        %v886 = vsub.s32 %v883, %v885
        %v887 = vrot.slane %v865, %v886
        %v889 = vunpack.c.l.s4 1966171168
        %v890 = vunpack.c.0.s8 %v889
        %v891 = vlaneseq
        %v892 = vshrl.u32 %v891, 7
        %v893 = vsub.s32 %v890, %v892
        %v894 = vrot.slane %v866, %v893
        %v895 = vcombine.low %v873, %v880
        %v896 = vcombine.low %v887, %v894
        %v898 = vunpack.c.l.s4 1966171168
        %v899 = vunpack.c.0.s8 %v898
        %v900 = vlaneseq
        %v901 = vshrl.u32 %v900, 7
        %v902 = vsub.s32 %v899, %v901
        %v903 = vrot.slane %v895, %v902
        %v905 = vunpack.c.l.s4 1966171168
        %v906 = vunpack.c.0.s8 %v905
        %v907 = vlaneseq
        %v908 = vshrl.u32 %v907, 7
        %v909 = vsub.s32 %v906, %v908
        %v910 = vrot.slane %v896, %v909
        %v911 = vcombine.low %v903, %v910
        %v912 = vcombine.low %v736, %v740
        %v913 = vcombine.low %v744, %v748
        %v914 = vcombine.low %v752, %v756
        %v915 = vcombine.low %v760, %v764
        %v917 = vunpack.c.l.s4 1966171168
        %v918 = vunpack.c.0.s8 %v917
        %v919 = vlaneseq
        %v920 = vshrl.u32 %v919, 7
        %v921 = vsub.s32 %v918, %v920
        %v922 = vrot.slane %v912, %v921
        %v924 = vunpack.c.l.s4 1966171168
        %v925 = vunpack.c.0.s8 %v924
        %v926 = vlaneseq
        %v927 = vshrl.u32 %v926, 7
        %v928 = vsub.s32 %v925, %v927
        %v929 = vrot.slane %v913, %v928
        %v931 = vunpack.c.l.s4 1966171168
        %v932 = vunpack.c.0.s8 %v931
        %v933 = vlaneseq
        %v934 = vshrl.u32 %v933, 7
        %v935 = vsub.s32 %v932, %v934
        %v936 = vrot.slane %v914, %v935
        %v938 = vunpack.c.l.s4 1966171168
        %v939 = vunpack.c.0.s8 %v938
        %v940 = vlaneseq
        %v941 = vshrl.u32 %v940, 7
        %v942 = vsub.s32 %v939, %v941
        %v943 = vrot.slane %v915, %v942
        %v944 = vcombine.low %v922, %v929
        %v945 = vcombine.low %v936, %v943
        %v947 = vunpack.c.l.s4 1966171168
        %v948 = vunpack.c.0.s8 %v947
        %v949 = vlaneseq
        %v950 = vshrl.u32 %v949, 7
        %v951 = vsub.s32 %v948, %v950
        %v952 = vrot.slane %v944, %v951
        %v954 = vunpack.c.l.s4 1966171168
        %v955 = vunpack.c.0.s8 %v954
        %v956 = vlaneseq
        %v957 = vshrl.u32 %v956, 7
        %v958 = vsub.s32 %v955, %v957
        %v959 = vrot.slane %v945, %v958
        %v960 = vcombine.low %v952, %v959
        %961 = vset.pattern.permute.xlu0 0
        %962 = vperm.xlu0 %961, %v813
        %v963 = vpop.permute.xlu0 %962
        %964 = vset.pattern.permute.xlu0 0
        %965 = vperm.xlu0 %964, %v862
        %v966 = vpop.permute.xlu0 %965
        %967 = vset.pattern.permute.xlu0 0
        %968 = vperm.xlu0 %967, %v911
        %v969 = vpop.permute.xlu0 %968
        %970 = vset.pattern.permute.xlu0 0
        %971 = vperm.xlu0 %970, %v960
        %v972 = vpop.permute.xlu0 %971
        %v973 = vlaneseq
        %v974 = vshrl.u32 %v973, 7
        %v975 = vsub.s32 %v575, %v974
        %v976 = vrot.slane %v963, %v975
        %v977 = vlaneseq
        %v978 = vshrl.u32 %v977, 7
        %v979 = vsub.s32 %v580, %v978
        %v980 = vrot.slane %v966, %v979
        %v981 = vsel %vm585, %v980, %v976
        %v982 = vlaneseq
        %v983 = vshrl.u32 %v982, 7
        %v984 = vsub.s32 %v587, %v983
        %v985 = vrot.slane %v969, %v984
        %v986 = vsel %vm592, %v985, %v981
        %v987 = vlaneseq
        %v988 = vshrl.u32 %v987, 7
        %v989 = vsub.s32 %v594, %v988
        %v990 = vrot.slane %v972, %v989
        %v991 = vsel %vm599, %v990, %v986
        %v993 = vunpack.c.l.s4 1966171168
        %v994 = vunpack.c.0.s8 %v993
        %v995 = vlaneseq
        %v996 = vshrl.u32 %v995, 7
        %v997 = vsub.s32 %v994, %v996
        %v998 = vrot.slane %v991, %v997
        %v1000 = vunpack.c.l.s4 1966171168
        %v1001 = vunpack.c.0.s8 %v1000
        %v1002 = vlaneseq
        %v1003 = vshrl.u32 %v1002, 7
        %v1004 = vsub.s32 %v1001, %v1003
        %v1005 = vrot.slane %v998, %v1004
        %v1007 = vmax.f32 %v620, %v1005
        %1008 = vst.msk [vmem:[%s619] sm:$0x1] %vm617, %v1007
        // Predicated region
        $region41: #{tpu_custom_call.1} parent=31 // pred_check
          %p1009 = pneg %p205
        $region42: #{tpu_custom_call.1} parent=31 // pred_check_branch
          %1011 = sbr.rel (%p1009) target = $region44
        $region43: #{tpu_custom_call.1} parent=31 // pred_region
          %v1012 = vld [vmem:[%s1] sm:$0xff]
          %v1013 = vld [vmem:[%s1 + $0x8] sm:$0xff]
          %v1014 = vld [vmem:[%s1 + $0x10] sm:$0xff]
          %v1015 = vld [vmem:[%s1 + $0x18] sm:$0xff]
          %v1016 = vld [vmem:[%s2] sm:$0x3]
          %v1017 = vld [vmem:[#allocation2] sm:$0x1]
          %v1018 = vmul.f32 %v1017, 0.00390625
          %v1019 = vld [vmem:[%s619] sm:$0x1]
          %vm1020 = vcmask 261120
          %v1022 = vsel %vm1020, %v1018, 0
          %1024 = vmatprep.subr.mxu0 0.0
          %1025 = vmatpush1.msra.mxu0 0.0
          %1026 = vmatprep.subr.mxu0 0.0
          %1027 = vmatpush1.msra.mxu0 0.0
          %1028 = vmatprep.subr.mxu0 0.0
          %1029 = vmatpush1.msra.mxu0 0.0
          %1030 = vmatprep.subr.mxu0 0.0
          %1031 = vmatpush1.msra.mxu0 0.0
          %1032 = vmatprep.subr.mxu0 0.0
          %1033 = vmatpush1.msra.mxu0 0.0
          %1034 = vmatprep.subr.mxu0 0.0
          %1035 = vmatpush1.msra.mxu0 0.0
          %1036 = vmatprep.subr.mxu0 0.0
          %1037 = vmatpush1.msra.mxu0 0.0
          %1038 = vmatprep.subr.mxu0 0.0
          %1039 = vmatpush1.msra.mxu0 0.0
          %1040 = vmatprep.subr.mxu0 0.0
          %1041 = vmatpush1.msra.mxu0 0.0
          %1042 = vmatprep.subr.mxu0 0.0
          %1043 = vmatpush1.msra.mxu0 0.0
          %1044 = vmatprep.subr.mxu0 0.0
          %1045 = vmatpush1.msra.mxu0 0.0
          %1046 = vmatprep.subr.mxu0 0.0
          %1047 = vmatpush1.msra.mxu0 0.0
          %1048 = vmatprep.subr.mxu0 0.0
          %1049 = vmatpush1.msra.mxu0 %v1015
          %1050 = vmatprep.subr.mxu0 0.0
          %1051 = vmatpush1.msra.mxu0 %v1014
          %1052 = vmatprep.subr.mxu0 0.0
          %1053 = vmatpush1.msra.mxu0 %v1013
          %1054 = vmatprep.subr.mxu0 0.0
          %1055 = vmatpush1.msra.mxu0 %v1012
          %1056 = vmatprep.subr.mxu0 0.0
          %1057 = vmatpush2.msra.mxu0 0.0
          %1058 = vmatprep.subr.mxu0 0.0
          %1059 = vmatpush2.msra.mxu0 0.0
          %1060 = vmatprep.subr.mxu0 0.0
          %1061 = vmatpush2.msra.mxu0 0.0
          %1062 = vmatprep.subr.mxu0 0.0
          %1063 = vmatpush2.msra.mxu0 0.0
          %1064 = vmatprep.subr.mxu0 0.0
          %1065 = vmatpush2.msra.mxu0 0.0
          %1066 = vmatprep.subr.mxu0 0.0
          %1067 = vmatpush2.msra.mxu0 0.0
          %1068 = vmatprep.subr.mxu0 0.0
          %1069 = vmatpush2.msra.mxu0 0.0
          %1070 = vmatprep.subr.mxu0 0.0
          %1071 = vmatpush2.msra.mxu0 0.0
          %1072 = vmatprep.subr.mxu0 0.0
          %1073 = vmatpush2.msra.mxu0 0.0
          %1074 = vmatprep.subr.mxu0 0.0
          %1075 = vmatpush2.msra.mxu0 0.0
          %1076 = vmatprep.subr.mxu0 0.0
          %1077 = vmatpush2.msra.mxu0 0.0
          %1078 = vmatprep.subr.mxu0 0.0
          %1079 = vmatpush2.msra.mxu0 0.0
          %1080 = vmatprep.subr.mxu0 0.0
          %1081 = vmatpush2.msra.mxu0 0.0
          %1082 = vmatprep.subr.mxu0 0.0
          %1083 = vmatpush2.msra.mxu0 0.0
          %1084 = vmatprep.subr.mxu0 0.0
          %1085 = vmatpush2.msra.mxu0 0.0
          %1086 = vmatprep.subr.mxu0 0.0
          %1087 = vmatpush2.msra.mxu0 0.0
          %1088 = vmatprep.mubr.f32.mxu0 0.0
          %1089 = vmatmul.mubr.f32.gmra.mxu0 %v1022
          %v1090 = vpop.f32.mrf.mxu0
          %v1091 = vadd.f32 0.0, %v1090
          %v1092 = vpop.f32.mrf.mxu0
          %1093 = vdwg.mxu0
          %v1094 = vmax.f32 %v1091, 0.0
          %v1096 = vsel %vm1020, %v1019, 0
          %1098 = vmatprep.subr.mxu0 0.0
          %1099 = vmatpush1.msra.mxu0 0.0
          %1100 = vmatprep.subr.mxu0 0.0
          %1101 = vmatpush1.msra.mxu0 0.0
          %1102 = vmatprep.subr.mxu0 0.0
          %1103 = vmatpush1.msra.mxu0 0.0
          %1104 = vmatprep.subr.mxu0 0.0
          %1105 = vmatpush1.msra.mxu0 0.0
          %1106 = vmatprep.subr.mxu0 0.0
          %1107 = vmatpush1.msra.mxu0 0.0
          %1108 = vmatprep.subr.mxu0 0.0
          %1109 = vmatpush1.msra.mxu0 0.0
          %1110 = vmatprep.subr.mxu0 0.0
          %1111 = vmatpush1.msra.mxu0 0.0
          %1112 = vmatprep.subr.mxu0 0.0
          %1113 = vmatpush1.msra.mxu0 0.0
          %1114 = vmatprep.subr.mxu0 0.0
          %1115 = vmatpush1.msra.mxu0 0.0
          %1116 = vmatprep.subr.mxu0 0.0
          %1117 = vmatpush1.msra.mxu0 0.0
          %1118 = vmatprep.subr.mxu0 0.0
          %1119 = vmatpush1.msra.mxu0 0.0
          %1120 = vmatprep.subr.mxu0 0.0
          %1121 = vmatpush1.msra.mxu0 0.0
          %1122 = vmatprep.subr.mxu0 0.0
          %1123 = vmatpush1.msra.mxu0 %v1015
          %1124 = vmatprep.subr.mxu0 0.0
          %1125 = vmatpush1.msra.mxu0 %v1014
          %1126 = vmatprep.subr.mxu0 0.0
          %1127 = vmatpush1.msra.mxu0 %v1013
          %1128 = vmatprep.subr.mxu0 0.0
          %1129 = vmatpush1.msra.mxu0 %v1012
          %1130 = vmatprep.subr.mxu0 0.0
          %1131 = vmatpush2.msra.mxu0 0.0
          %1132 = vmatprep.subr.mxu0 0.0
          %1133 = vmatpush2.msra.mxu0 0.0
          %1134 = vmatprep.subr.mxu0 0.0
          %1135 = vmatpush2.msra.mxu0 0.0
          %1136 = vmatprep.subr.mxu0 0.0
          %1137 = vmatpush2.msra.mxu0 0.0
          %1138 = vmatprep.subr.mxu0 0.0
          %1139 = vmatpush2.msra.mxu0 0.0
          %1140 = vmatprep.subr.mxu0 0.0
          %1141 = vmatpush2.msra.mxu0 0.0
          %1142 = vmatprep.subr.mxu0 0.0
          %1143 = vmatpush2.msra.mxu0 0.0
          %1144 = vmatprep.subr.mxu0 0.0
          %1145 = vmatpush2.msra.mxu0 0.0
          %1146 = vmatprep.subr.mxu0 0.0
          %1147 = vmatpush2.msra.mxu0 0.0
          %1148 = vmatprep.subr.mxu0 0.0
          %1149 = vmatpush2.msra.mxu0 0.0
          %1150 = vmatprep.subr.mxu0 0.0
          %1151 = vmatpush2.msra.mxu0 0.0
          %1152 = vmatprep.subr.mxu0 0.0
          %1153 = vmatpush2.msra.mxu0 0.0
          %1154 = vmatprep.subr.mxu0 0.0
          %1155 = vmatpush2.msra.mxu0 0.0
          %1156 = vmatprep.subr.mxu0 0.0
          %1157 = vmatpush2.msra.mxu0 0.0
          %1158 = vmatprep.subr.mxu0 0.0
          %1159 = vmatpush2.msra.mxu0 0.0
          %1160 = vmatprep.subr.mxu0 0.0
          %1161 = vmatpush2.msra.mxu0 0.0
          %1162 = vmatprep.mubr.f32.mxu0 0.0
          %1163 = vmatmul.mubr.f32.gmra.mxu0 %v1096
          %v1164 = vpop.f32.mrf.mxu0
          %v1165 = vadd.f32 0.0, %v1164
          %v1166 = vpop.f32.mrf.mxu0
          %1167 = vdwg.mxu0
          %v1168 = vmax.f32 %v1165, 0.0
          %vm1169 = vcmask 15360
          %v1171 = vsel %vm1169, %v1168, 0
          %vm1173 = vcmask 1041408
          %v1175 = vsel %vm1173, %v1016, 0
          %1177 = vmatprep.subr.mxu0 0.0
          %1178 = vmatpush1.msra.mxu0 0.0
          %1179 = vmatprep.subr.mxu0 0.0
          %1180 = vmatpush1.msra.mxu0 0.0
          %1181 = vmatprep.subr.mxu0 0.0
          %1182 = vmatpush1.msra.mxu0 0.0
          %1183 = vmatprep.subr.mxu0 0.0
          %1184 = vmatpush1.msra.mxu0 0.0
          %1185 = vmatprep.subr.mxu0 0.0
          %1186 = vmatpush1.msra.mxu0 0.0
          %1187 = vmatprep.subr.mxu0 0.0
          %1188 = vmatpush1.msra.mxu0 0.0
          %1189 = vmatprep.subr.mxu0 0.0
          %1190 = vmatpush1.msra.mxu0 0.0
          %1191 = vmatprep.subr.mxu0 0.0
          %1192 = vmatpush1.msra.mxu0 0.0
          %1193 = vmatprep.subr.mxu0 0.0
          %1194 = vmatpush1.msra.mxu0 0.0
          %1195 = vmatprep.subr.mxu0 0.0
          %1196 = vmatpush1.msra.mxu0 0.0
          %1197 = vmatprep.subr.mxu0 0.0
          %1198 = vmatpush1.msra.mxu0 0.0
          %1199 = vmatprep.subr.mxu0 0.0
          %1200 = vmatpush1.msra.mxu0 0.0
          %1201 = vmatprep.subr.mxu0 0.0
          %1202 = vmatpush1.msra.mxu0 0.0
          %1203 = vmatprep.subr.mxu0 0.0
          %1204 = vmatpush1.msra.mxu0 0.0
          %1205 = vmatprep.subr.mxu0 0.0
          %1206 = vmatpush1.msra.mxu0 0.0
          %1207 = vmatprep.subr.mxu0 0.0
          %1208 = vmatpush1.msra.mxu0 %v1175
          %1209 = vmatprep.subr.mxu0 0.0
          %1210 = vmatpush2.msra.mxu0 0.0
          %1211 = vmatprep.subr.mxu0 0.0
          %1212 = vmatpush2.msra.mxu0 0.0
          %1213 = vmatprep.subr.mxu0 0.0
          %1214 = vmatpush2.msra.mxu0 0.0
          %1215 = vmatprep.subr.mxu0 0.0
          %1216 = vmatpush2.msra.mxu0 0.0
          %1217 = vmatprep.subr.mxu0 0.0
          %1218 = vmatpush2.msra.mxu0 0.0
          %1219 = vmatprep.subr.mxu0 0.0
          %1220 = vmatpush2.msra.mxu0 0.0
          %1221 = vmatprep.subr.mxu0 0.0
          %1222 = vmatpush2.msra.mxu0 0.0
          %1223 = vmatprep.subr.mxu0 0.0
          %1224 = vmatpush2.msra.mxu0 0.0
          %1225 = vmatprep.subr.mxu0 0.0
          %1226 = vmatpush2.msra.mxu0 0.0
          %1227 = vmatprep.subr.mxu0 0.0
          %1228 = vmatpush2.msra.mxu0 0.0
          %1229 = vmatprep.subr.mxu0 0.0
          %1230 = vmatpush2.msra.mxu0 0.0
          %1231 = vmatprep.subr.mxu0 0.0
          %1232 = vmatpush2.msra.mxu0 0.0
          %1233 = vmatprep.subr.mxu0 0.0
          %1234 = vmatpush2.msra.mxu0 0.0
          %1235 = vmatprep.subr.mxu0 0.0
          %1236 = vmatpush2.msra.mxu0 0.0
          %1237 = vmatprep.subr.mxu0 0.0
          %1238 = vmatpush2.msra.mxu0 0.0
          %1239 = vmatprep.subr.mxu0 0.0
          %1240 = vmatpush2.msra.mxu0 0.0
          %1241 = vmatprep.mubr.f32.mxu0 0.0
          %1242 = vmatmul.mubr.f32.gmra.mxu0 %v1171
          %v1243 = vpop.f32.mrf.mxu0
          %v1244 = vadd.f32 0.0, %v1243
          %v1245 = vpop.f32.mrf.mxu0
          %1246 = vdwg.mxu0
          %v1248 = vsel %vm1169, %v1094, 0
          %1250 = vmatprep.subr.mxu0 0.0
          %1251 = vmatpush1.msra.mxu0 0.0
          %1252 = vmatprep.subr.mxu0 0.0
          %1253 = vmatpush1.msra.mxu0 0.0
          %1254 = vmatprep.subr.mxu0 0.0
          %1255 = vmatpush1.msra.mxu0 0.0
          %1256 = vmatprep.subr.mxu0 0.0
          %1257 = vmatpush1.msra.mxu0 0.0
          %1258 = vmatprep.subr.mxu0 0.0
          %1259 = vmatpush1.msra.mxu0 0.0
          %1260 = vmatprep.subr.mxu0 0.0
          %1261 = vmatpush1.msra.mxu0 0.0
          %1262 = vmatprep.subr.mxu0 0.0
          %1263 = vmatpush1.msra.mxu0 0.0
          %1264 = vmatprep.subr.mxu0 0.0
          %1265 = vmatpush1.msra.mxu0 0.0
          %1266 = vmatprep.subr.mxu0 0.0
          %1267 = vmatpush1.msra.mxu0 0.0
          %1268 = vmatprep.subr.mxu0 0.0
          %1269 = vmatpush1.msra.mxu0 0.0
          %1270 = vmatprep.subr.mxu0 0.0
          %1271 = vmatpush1.msra.mxu0 0.0
          %1272 = vmatprep.subr.mxu0 0.0
          %1273 = vmatpush1.msra.mxu0 0.0
          %1274 = vmatprep.subr.mxu0 0.0
          %1275 = vmatpush1.msra.mxu0 0.0
          %1276 = vmatprep.subr.mxu0 0.0
          %1277 = vmatpush1.msra.mxu0 0.0
          %1278 = vmatprep.subr.mxu0 0.0
          %1279 = vmatpush1.msra.mxu0 0.0
          %1280 = vmatprep.subr.mxu0 0.0
          %1281 = vmatpush1.msra.mxu0 %v1175
          %1282 = vmatprep.subr.mxu0 0.0
          %1283 = vmatpush2.msra.mxu0 0.0
          %1284 = vmatprep.subr.mxu0 0.0
          %1285 = vmatpush2.msra.mxu0 0.0
          %1286 = vmatprep.subr.mxu0 0.0
          %1287 = vmatpush2.msra.mxu0 0.0
          %1288 = vmatprep.subr.mxu0 0.0
          %1289 = vmatpush2.msra.mxu0 0.0
          %1290 = vmatprep.subr.mxu0 0.0
          %1291 = vmatpush2.msra.mxu0 0.0
          %1292 = vmatprep.subr.mxu0 0.0
          %1293 = vmatpush2.msra.mxu0 0.0
          %1294 = vmatprep.subr.mxu0 0.0
          %1295 = vmatpush2.msra.mxu0 0.0
          %1296 = vmatprep.subr.mxu0 0.0
          %1297 = vmatpush2.msra.mxu0 0.0
          %1298 = vmatprep.subr.mxu0 0.0
          %1299 = vmatpush2.msra.mxu0 0.0
          %1300 = vmatprep.subr.mxu0 0.0
          %1301 = vmatpush2.msra.mxu0 0.0
          %1302 = vmatprep.subr.mxu0 0.0
          %1303 = vmatpush2.msra.mxu0 0.0
          %1304 = vmatprep.subr.mxu0 0.0
          %1305 = vmatpush2.msra.mxu0 0.0
          %1306 = vmatprep.subr.mxu0 0.0
          %1307 = vmatpush2.msra.mxu0 0.0
          %1308 = vmatprep.subr.mxu0 0.0
          %1309 = vmatpush2.msra.mxu0 0.0
          %1310 = vmatprep.subr.mxu0 0.0
          %1311 = vmatpush2.msra.mxu0 0.0
          %1312 = vmatprep.subr.mxu0 0.0
          %1313 = vmatpush2.msra.mxu0 0.0
          %1314 = vmatprep.mubr.f32.mxu0 0.0
          %1315 = vmatmul.mubr.f32.gmra.mxu0 %v1248
          %v1316 = vpop.f32.mrf.mxu0
          %v1317 = vadd.f32 %v1244, %v1316
          %v1318 = vpop.f32.mrf.mxu0
          %1319 = vdwg.mxu0
          %v1320 = vxor.u32 %v1317, 2147483648
          %v1321 = vmul.f32 %v1320, 1.442695
          %v1322 = vpow.pop %v1321
          %v1323 = vadd.f32 %v1322, 1.0
          %v1324 = vrcp.pop %v1323
          %v1325 = vmul.f32 1.0, %v1324
          %1326 = vst.msk [vmem:[%s203] sm:$0x1] %vm617, %v1325
        $region44: #{tpu_custom_call.1} parent=31 // pred_fallthru
          _
        %s1327 = sand.u32 %s110, 1
        %s1328 = scalar_lea.sflag [#allocation5], %s1327
        %s1329 = sand.u32 %s110, 1
        %s1330 = scalar_lea.vmem [#allocation6], %s1329
        // Predicated region
        $region45: #{tpu_custom_call.1} parent=31 // pred_check
          %p1331 = pneg %p120
        $region46: #{tpu_custom_call.1} parent=31 // pred_check_branch
          %1333 = sbr.rel (%p1331) target = $region48
        $region47: #{tpu_custom_call.1} parent=31 // pred_region
          %s1335 = ssub.s32 16, 16
          %1336 = vsyncadd %s1328, %s1335
          %s1337 = smul.addr %s24, 16
          %s1338 = scalar_lea.hbm %s3, %s1337
          %s1340 = sshll.u32 %s1330, 4
          %s1341 = int_to_ptr.vmem [resolvable:$true] %s1340
          %1343 = dma.vmem_to_hbm [thread:$0]  %s1341, 16, %s1338, %s1328
        $region48: #{tpu_custom_call.1} parent=31 // pred_fallthru
          _
      $region32: #{tpu_custom_call.1} parent=5 // pred_fallthru
        _
      %p1344 = scmp.le.s32.totalorder 2, %s15
      // Predicated region
      $region49: #{tpu_custom_call.1} parent=5 // pred_check
        %p1345 = pneg %p1344
      $region50: #{tpu_custom_call.1} parent=5 // pred_check_branch
        %1347 = sbr.rel (%p1345) target = $region52
      $region51: #{tpu_custom_call.1} parent=5 // pred_region
        %s1348 = ssub.s32 %s15, 2
        // Predicated region
        $region53: #{tpu_custom_call.1} parent=51 // pred_check
          %p1349 = pneg %p126
        $region54: #{tpu_custom_call.1} parent=51 // pred_check_branch
          %1351 = sbr.rel (%p1349) target = $region56
        $region55: #{tpu_custom_call.1} parent=51 // pred_region
          %s1352 = sand.u32 %s111, 1
          %s1353 = scalar_lea.sflag [#allocation5], %s1352
          %s1354 = sand.u32 %s111, 1
          %s1355 = scalar_lea.vmem [#allocation6], %s1354
          %1356 = dma.done %s1353, 16
        $region56: #{tpu_custom_call.1} parent=51 // pred_fallthru
          _
      $region52: #{tpu_custom_call.1} parent=5 // pred_fallthru
        _
    $region6: #{tpu_custom_call.1} parent=1 // loop_footer
      %s19 = sadd.s32 1, %s15
    $region7: #{tpu_custom_call.1} parent=1 // loop_footer_branch
      %14 = sbr.rel target = $region3
    $region8: #{tpu_custom_call.1} parent=1 // loop_exit
      _
    %1357 = vsyncpa [#allocation4], 1
    %s1358 = scalar_lea.sflag [#allocation4], 1
    %1359 = vsyncpa %s1358, 1
    %1360 = vsyncpa [#allocation5], 1
    %s1361 = scalar_lea.sflag [#allocation5], 1
    %1362 = vsyncpa %s1361, 1

</llo_original>
